<compile_context>
chip_gen: v5e
topology: v5e:2x2
jax: 0.10.0
libtpu: 0.0.40
codegen_flags: <defaults>
</compile_context>

<pallas_src>
import functools

import jax
import jax.numpy as jnp
from jax.experimental import pallas as pl
from jax.experimental.pallas import tpu as pltpu


def _round_up(n, m):
    return ((n + m - 1) // m) * m


def _mlp_kernel(x_ref, w1_ref, b1_ref, w2_ref, b2_ref, wh_ref, bh_ref,
                out_ref, *, num_actions):
    # MXU operands in bf16 (weights already bf16), accumulate in f32.
    x = x_ref[...].astype(jnp.bfloat16)                               # (TM, D)

    # fc1 + ReLU (bias/ReLU in f32 on the VPU)
    h1 = jnp.dot(x, w1_ref[...], preferred_element_type=jnp.float32) + b1_ref[...]
    h1 = jnp.maximum(h1, 0.0)                                         # (TM, 128)

    # fc2 (padded to 128 lanes; padded lanes are exactly 0)
    h2 = jnp.dot(h1.astype(jnp.bfloat16), w2_ref[...],
                 preferred_element_type=jnp.float32) + b2_ref[...]

    # fused policy+value head: lanes [0, A) = policy logits, lane A = value
    head = jnp.dot(h2.astype(jnp.bfloat16), wh_ref[...],
                   preferred_element_type=jnp.float32) + bh_ref[...]

    lane = jax.lax.broadcasted_iota(jnp.int32, head.shape, dimension=1)
    is_policy = lane < num_actions

    # softmax over the real action lanes only
    logits = jnp.where(is_policy, head, jnp.float32(-1e30))
    m = jnp.max(logits, axis=-1, keepdims=True)
    e = jnp.exp(logits - m)                       # masked lanes -> ~0
    denom = jnp.sum(e, axis=-1, keepdims=True)
    inv = pl.reciprocal(denom, approx=True)       # EUP slot
    inv = inv * (2.0 - denom * inv)               # one Newton step: ~exact norm
    probs = e * inv

    # lane-dense bf16 output slab: policy probs in [0, A), raw value in lane A
    out_ref[...] = jnp.where(lane == num_actions, head, probs).astype(out_ref.dtype)


def prepare_params(params, num_actions):
    """One-time parameter prep (hoisted out of the forward path).

    Pads fc2 to 128 lanes, fuses policy+value heads into one lane-dense
    [128, 128] weight (policy in lanes [0, A), value in lane A, rest zero),
    and casts the matmul weights to bf16.  Biases stay f32.
    """
    w1, b1, w2, b2, wp, bp, wv, bv = params
    h1 = w1.shape[1]
    h2 = w2.shape[1]
    h2p = _round_up(max(h2, 128), 128)
    nh = _round_up(num_actions + 1, 128)

    w2p = jnp.zeros((h1, h2p), jnp.float32).at[:, :h2].set(w2)
    b2p = jnp.zeros((1, h2p), jnp.float32).at[:, :h2].set(b2)

    wh = jnp.zeros((h2p, nh), jnp.float32)
    wh = wh.at[:h2, :num_actions].set(wp)
    wh = wh.at[:h2, num_actions].set(wv[:, 0])
    bh = jnp.zeros((1, nh), jnp.float32)
    bh = bh.at[:, :num_actions].set(bp)
    bh = bh.at[:, num_actions].set(bv[0])

    return (w1.astype(jnp.bfloat16),
            b1.reshape(1, -1).astype(jnp.float32),
            w2p.astype(jnp.bfloat16),
            b2p,
            wh.astype(jnp.bfloat16),
            bh)


def mlp_forward(x, prepared, num_actions, *, block_m=512):
    """x: [input_size] or [B, input_size] float32.  `prepared` comes from
    prepare_params (called once, NOT per forward).

    Returns (policy, value): shapes ([A], [1]) for a single state, or
    ([B, A], [B, 1]) for a batch of states.
    """
    single = (x.ndim == 1)
    if single:
        x = x.reshape(1, -1)
    x = x.astype(jnp.float32)

    batch, d = x.shape
    w1, b1, w2p, b2p, wh, bh = prepared
    nh = wh.shape[1]

    # Batch tile: multiples of 16 sublanes (bf16 output is natively packed).
    tm = min(block_m, max(16, _round_up(batch, 16)))
    # v7x: prefer >= 2 grid steps so both TensorCores get work on the
    # "parallel" batch axis (free on v5e/v6e, which have one TC).
    if batch >= 32 and _round_up(batch, tm) // tm < 2:
        tm = max(16, _round_up((batch + 1) // 2, 16))
    bp_ = _round_up(batch, tm)
    if bp_ != batch:
        x = jnp.pad(x, ((0, bp_ - batch), (0, 0)))

    const = lambda i: (0, 0)   # weights: same block every step -> VMEM-resident
    kernel = functools.partial(_mlp_kernel, num_actions=num_actions)

    out = pl.pallas_call(
        kernel,
        out_shape=jax.ShapeDtypeStruct((bp_, nh), jnp.bfloat16),
        grid=(bp_ // tm,),
        in_specs=[
            pl.BlockSpec((tm, d), lambda i: (i, 0)),   # x tile (pipelined)
            pl.BlockSpec(w1.shape, const),
            pl.BlockSpec(b1.shape, const),
            pl.BlockSpec(w2p.shape, const),
            pl.BlockSpec(b2p.shape, const),
            pl.BlockSpec(wh.shape, const),
            pl.BlockSpec(bh.shape, const),
        ],
        out_specs=pl.BlockSpec((tm, nh), lambda i: (i, 0)),
        compiler_params=pltpu.CompilerParams(
            dimension_semantics=("parallel",)),
    )(x, w1, b1, w2p, b2p, wh, bh)

    policy = out[:batch, :num_actions].astype(jnp.float32)
    value = out[:batch, num_actions:num_actions + 1].astype(jnp.float32)
    if single:
        return policy[0], value[0]
    return policy, value


def init_params(key, input_size, num_actions):
    """Deterministic init mimicking nn.Linear's U(-1/sqrt(fan_in), 1/sqrt(fan_in)).
    Weights stored as [in, out] (transpose of PyTorch's [out, in])."""
    def linear(key, fan_in, fan_out):
        kw, kb = jax.random.split(key)
        bound = 1.0 / jnp.sqrt(fan_in)
        w = jax.random.uniform(kw, (fan_in, fan_out), jnp.float32, -bound, bound)
        b = jax.random.uniform(kb, (fan_out,), jnp.float32, -bound, bound)
        return w, b

    k1, k2, k3, k4 = jax.random.split(key, 4)
    w1, b1 = linear(k1, input_size, 128)
    w2, b2 = linear(k2, 128, 64)
    wp, bp = linear(k3, 64, num_actions)
    wv, bv = linear(k4, 64, 1)
    return (w1, b1, w2, b2, wp, bp, wv, bv)


def _reference(x, params):
    """Pure-f32 reference matching the PyTorch module's inference forward."""
    w1, b1, w2, b2, wp, bp, wv, bv = params
    h1 = jnp.maximum(x @ w1 + b1, 0.0)
    h2 = h1 @ w2 + b2
    logits = h2 @ wp + bp
    policy = jax.nn.softmax(logits, axis=-1)   # == dim=0 for a 1-D state
    value = h2 @ wv + bv
    return policy, value


# TODO(synk): training branch (targets -> NLLLoss + MSELoss) is not part of the
# kernel; only the inference forward is implemented.

if __name__ == "__main__":
    input_size = 32
    num_actions = 8
    batch = 32

    key = jax.random.PRNGKey(0)
    k_params, k_x = jax.random.split(key)
    params = init_params(k_params, input_size, num_actions)

    # One-time prep (padding / head fusion / bf16 cast) -- NOT in the hot path.
    prepared = prepare_params(params, num_actions)

    xb = jax.random.normal(k_x, (batch, input_size), jnp.float32)

    # Batched evaluation (MCTS leaf batch); default block_m=512, the wrapper
    # splits this small batch into two tiles so the grid is exercised.
    policy, value = mlp_forward(xb, prepared, num_actions)
    jax.block_until_ready((policy, value))

    ref_policy, ref_value = _reference(xb, params)
    assert policy.shape == (batch, num_actions) and value.shape == (batch, 1)
    # bf16 weights + bf16 output slab -> ~1e-2 level tolerances vs f32 reference
    assert jnp.allclose(policy, ref_policy, atol=2e-2, rtol=2e-2)
    assert jnp.allclose(value, ref_value, atol=2e-2, rtol=2e-2)
    # Newton-refined reciprocal: each policy row sums to ~1
    assert jnp.allclose(jnp.sum(policy, axis=-1), 1.0, atol=5e-3)

    # Original single-state semantics (softmax over dim=0 of the 1-D output)
    x1 = xb[0]
    p1, v1 = mlp_forward(x1, prepared, num_actions)
    jax.block_until_ready((p1, v1))
    rp1, rv1 = _reference(x1, params)
    assert p1.shape == (num_actions,) and v1.shape == (1,)
    assert jnp.allclose(p1, rp1, atol=2e-2, rtol=2e-2)
    assert jnp.allclose(v1, rv1, atol=2e-2, rtol=2e-2)

    print("KERNEL_OK")
</pallas_src>

<mosaic_0001>
module attributes {stable_mosaic.version = 11 : i64} {
  func.func @_mlp_kernel(%arg0: i32, %arg1: memref<16x32xf32, #tpu.memory_space<vmem>>, %arg2: memref<32x128xbf16, #tpu.memory_space<vmem>>, %arg3: memref<1x128xf32, #tpu.memory_space<vmem>>, %arg4: memref<128x128xbf16, #tpu.memory_space<vmem>>, %arg5: memref<1x128xf32, #tpu.memory_space<vmem>>, %arg6: memref<128x128xbf16, #tpu.memory_space<vmem>>, %arg7: memref<1x128xf32, #tpu.memory_space<vmem>>, %arg8: memref<16x128xbf16, #tpu.memory_space<vmem>>) attributes {dimension_semantics = [#tpu.dimension_semantics<parallel>], iteration_bounds = array<i64: 2>, scalar_prefetch = 0 : i64, scratch_operands = 0 : i64, tpu.core_type = #tpu.core_type<tc>, window_params = [{transform_indices = @transform_0, window_bounds = array<i64: 16, 32>}, {pipeline_mode = #tpu.pipeline_mode<synchronous>, transform_indices = @transform_1, window_bounds = array<i64: 32, 128>}, {pipeline_mode = #tpu.pipeline_mode<synchronous>, transform_indices = @transform_2, window_bounds = array<i64: 1, 128>}, {pipeline_mode = #tpu.pipeline_mode<synchronous>, transform_indices = @transform_3, window_bounds = array<i64: 128, 128>}, {pipeline_mode = #tpu.pipeline_mode<synchronous>, transform_indices = @transform_4, window_bounds = array<i64: 1, 128>}, {pipeline_mode = #tpu.pipeline_mode<synchronous>, transform_indices = @transform_5, window_bounds = array<i64: 128, 128>}, {pipeline_mode = #tpu.pipeline_mode<synchronous>, transform_indices = @transform_6, window_bounds = array<i64: 1, 128>}, {transform_indices = @transform_7, window_bounds = array<i64: 16, 128>}]} {
    %c0 = arith.constant 0 : index
    %c0_0 = arith.constant 0 : index
    %0 = vector.load %arg1[%c0, %c0_0] : memref<16x32xf32, #tpu.memory_space<vmem>>, vector<16x32xf32>
    %1 = arith.truncf %0 : vector<16x32xf32> to vector<16x32xbf16>
    %c0_1 = arith.constant 0 : index
    %c0_2 = arith.constant 0 : index
    %2 = vector.load %arg2[%c0_1, %c0_2] : memref<32x128xbf16, #tpu.memory_space<vmem>>, vector<32x128xbf16>
    %cst = arith.constant dense<0.000000e+00> : vector<16x128xf32>
    %3 = tpu.matmul %1, %2, %cst {dimension_numbers = #tpu.dot_dimension_numbers<[1], [0], [0], [1], [0, 0, 1, 1], [], []>} : vector<16x32xbf16>, vector<32x128xbf16>, vector<16x128xf32> -> vector<16x128xf32>
    %c0_3 = arith.constant 0 : index
    %c0_4 = arith.constant 0 : index
    %4 = vector.load %arg3[%c0_3, %c0_4] : memref<1x128xf32, #tpu.memory_space<vmem>>, vector<1x128xf32>
    %5 = vector.broadcast %4 : vector<1x128xf32> to vector<16x128xf32>
    %6 = arith.addf %3, %5 : vector<16x128xf32>
    %cst_5 = arith.constant 0.000000e+00 : f32
    %7 = vector.broadcast %cst_5 : f32 to vector<16x128xf32>
    %8 = arith.maximumf %6, %7 : vector<16x128xf32>
    %9 = arith.truncf %8 : vector<16x128xf32> to vector<16x128xbf16>
    %c0_6 = arith.constant 0 : index
    %c0_7 = arith.constant 0 : index
    %10 = vector.load %arg4[%c0_6, %c0_7] : memref<128x128xbf16, #tpu.memory_space<vmem>>, vector<128x128xbf16>
    %cst_8 = arith.constant dense<0.000000e+00> : vector<16x128xf32>
    %11 = tpu.matmul %9, %10, %cst_8 {dimension_numbers = #tpu.dot_dimension_numbers<[1], [0], [0], [1], [0, 0, 1, 1], [], []>} : vector<16x128xbf16>, vector<128x128xbf16>, vector<16x128xf32> -> vector<16x128xf32>
    %c0_9 = arith.constant 0 : index
    %c0_10 = arith.constant 0 : index
    %12 = vector.load %arg5[%c0_9, %c0_10] : memref<1x128xf32, #tpu.memory_space<vmem>>, vector<1x128xf32>
    %13 = vector.broadcast %12 : vector<1x128xf32> to vector<16x128xf32>
    %14 = arith.addf %11, %13 : vector<16x128xf32>
    %15 = arith.truncf %14 : vector<16x128xf32> to vector<16x128xbf16>
    %c0_11 = arith.constant 0 : index
    %c0_12 = arith.constant 0 : index
    %16 = vector.load %arg6[%c0_11, %c0_12] : memref<128x128xbf16, #tpu.memory_space<vmem>>, vector<128x128xbf16>
    %cst_13 = arith.constant dense<0.000000e+00> : vector<16x128xf32>
    %17 = tpu.matmul %15, %16, %cst_13 {dimension_numbers = #tpu.dot_dimension_numbers<[1], [0], [0], [1], [0, 0, 1, 1], [], []>} : vector<16x128xbf16>, vector<128x128xbf16>, vector<16x128xf32> -> vector<16x128xf32>
    %c0_14 = arith.constant 0 : index
    %c0_15 = arith.constant 0 : index
    %18 = vector.load %arg7[%c0_14, %c0_15] : memref<1x128xf32, #tpu.memory_space<vmem>>, vector<1x128xf32>
    %19 = vector.broadcast %18 : vector<1x128xf32> to vector<16x128xf32>
    %20 = arith.addf %17, %19 : vector<16x128xf32>
    %21 = tpu.iota {dimensions = array<i32: 1>} : vector<16x128xi32>
    %c8_i32 = arith.constant 8 : i32
    %22 = vector.broadcast %c8_i32 : i32 to vector<16x128xi32>
    %23 = arith.cmpi slt, %21, %22 : vector<16x128xi32>
    %cst_16 = arith.constant -1.000000e+30 : f32
    %24 = vector.broadcast %cst_16 : f32 to vector<16x128xf32>
    %25 = arith.select %23, %20, %24 : vector<16x128xi1>, vector<16x128xf32>
    %cst_17 = arith.constant dense<0xFF800000> : vector<16xf32>
    %26 = vector.multi_reduction <maximumf>, %25, %cst_17 [1] : vector<16x128xf32> to vector<16xf32>
    %27 = vector.shape_cast %26 : vector<16xf32> to vector<16x1xf32>
    %28 = vector.broadcast %27 : vector<16x1xf32> to vector<16x128xf32>
    %29 = arith.subf %25, %28 : vector<16x128xf32>
    %30 = math.exp %29 : vector<16x128xf32>
    %cst_18 = arith.constant dense<0.000000e+00> : vector<16xf32>
    %31 = vector.multi_reduction <add>, %30, %cst_18 [1] : vector<16x128xf32> to vector<16xf32>
    %32 = vector.shape_cast %31 : vector<16xf32> to vector<16x1xf32>
    %33 = tpu.reciprocal %32 {approx = true} : vector<16x1xf32> -> vector<16x1xf32>
    %34 = arith.mulf %32, %33 : vector<16x1xf32>
    %cst_19 = arith.constant 2.000000e+00 : f32
    %35 = vector.broadcast %cst_19 : f32 to vector<16x1xf32>
    %36 = arith.subf %35, %34 : vector<16x1xf32>
    %37 = arith.mulf %33, %36 : vector<16x1xf32>
    %38 = vector.broadcast %37 : vector<16x1xf32> to vector<16x128xf32>
    %39 = arith.mulf %30, %38 : vector<16x128xf32>
    %c8_i32_20 = arith.constant 8 : i32
    %40 = vector.broadcast %c8_i32_20 : i32 to vector<16x128xi32>
    %41 = arith.cmpi eq, %21, %40 : vector<16x128xi32>
    %42 = arith.select %41, %20, %39 : vector<16x128xi1>, vector<16x128xf32>
    %43 = arith.truncf %42 : vector<16x128xf32> to vector<16x128xbf16>
    %c0_21 = arith.constant 0 : index
    %c0_22 = arith.constant 0 : index
    %44 = vector.load %arg8[%c0_21, %c0_22] : memref<16x128xbf16, #tpu.memory_space<vmem>>, vector<16x128xbf16>
    tpu.vector_store %arg8[%c0_21, %c0_22], %43 {strides = array<i32>} : memref<16x128xbf16, #tpu.memory_space<vmem>>, vector<16x128xbf16>,
    return
  }
  func.func @transform_0(%arg0: i32) -> (i32, i32) {
    %c0_i32 = arith.constant 0 : i32
    %c0_i32_0 = arith.constant 0 : i32
    return %arg0, %c0_i32 : i32, i32
  }
  func.func @transform_1(%arg0: i32) -> (i32, i32) {
    %c0_i32 = arith.constant 0 : i32
    %c0_i32_0 = arith.constant 0 : i32
    %c0_i32_1 = arith.constant 0 : i32
    return %c0_i32, %c0_i32_0 : i32, i32
  }
  func.func @transform_2(%arg0: i32) -> (i32, i32) {
    %c0_i32 = arith.constant 0 : i32
    %c0_i32_0 = arith.constant 0 : i32
    %c0_i32_1 = arith.constant 0 : i32
    return %c0_i32, %c0_i32_0 : i32, i32
  }
  func.func @transform_3(%arg0: i32) -> (i32, i32) {
    %c0_i32 = arith.constant 0 : i32
    %c0_i32_0 = arith.constant 0 : i32
    %c0_i32_1 = arith.constant 0 : i32
    return %c0_i32, %c0_i32_0 : i32, i32
  }
  func.func @transform_4(%arg0: i32) -> (i32, i32) {
    %c0_i32 = arith.constant 0 : i32
    %c0_i32_0 = arith.constant 0 : i32
    %c0_i32_1 = arith.constant 0 : i32
    return %c0_i32, %c0_i32_0 : i32, i32
  }
  func.func @transform_5(%arg0: i32) -> (i32, i32) {
    %c0_i32 = arith.constant 0 : i32
    %c0_i32_0 = arith.constant 0 : i32
    %c0_i32_1 = arith.constant 0 : i32
    return %c0_i32, %c0_i32_0 : i32, i32
  }
  func.func @transform_6(%arg0: i32) -> (i32, i32) {
    %c0_i32 = arith.constant 0 : i32
    %c0_i32_0 = arith.constant 0 : i32
    %c0_i32_1 = arith.constant 0 : i32
    return %c0_i32, %c0_i32_0 : i32, i32
  }
  func.func @transform_7(%arg0: i32) -> (i32, i32) {
    %c0_i32 = arith.constant 0 : i32
    %c0_i32_0 = arith.constant 0 : i32
    return %arg0, %c0_i32 : i32, i32
  }
}

</mosaic_0001>

<llo_original>
// kernel: tpu_custom_call.1
$region0: #{tpu_custom_call.1}
  #allocation0 [shape = 'u32[]', space=smem, size = 0x4, offset = 0x4, fixed_abs, tag = 'smem constant byte address 0x4 - core index']
  #allocation1 [shape = 'u32[72,128]{1,0:T(1,128)}', space=vmem, size = 0x9000, scoped, tag = 'internal scratch']
  %s0 = inlined_call_operand.hbm [shape: f32[32,32], index: 0, kind: input, shape index: {}]
  %s1 = inlined_call_operand.hbm [shape: bf16[32,128], index: 1, kind: input, shape index: {}]
  %s2 = inlined_call_operand.vmem [shape: f32[1,128], index: 2, kind: input, shape index: {}]
  %s3 = inlined_call_operand.hbm [shape: bf16[128,128], index: 3, kind: input, shape index: {}]
  %s4 = inlined_call_operand.vmem [shape: f32[1,128], index: 4, kind: input, shape index: {}]
  %s5 = inlined_call_operand.hbm [shape: bf16[128,128], index: 5, kind: input, shape index: {}]
  %s6 = inlined_call_operand.vmem [shape: f32[1,128], index: 6, kind: input, shape index: {}]
  %s7 = inlined_call_operand.hbm [shape: bf16[32,128], index: 7, kind: output, shape index: {}]
  %s8 = sld [smem:[#allocation0]]
  $region77: #{tpu_custom_call.1} parent=0
    _
  %s10 = ssub.s32 1, %s8
  %s11 = scalar_select 0, %s10, %s8
  $region1: #{tpu_custom_call.1} parent=0
    #allocation2 [shape = 'u8[16384]{0}', space=vmem, size = 0x4000, scoped, tag = 'input window, operand 0']
    #allocation3 [shape = 's32[2]{0}', space=sflag, size = 0x8, scoped, tag = 'scoped memory for tpu_custom_call.1']
    #allocation4 [shape = 's32[2]{0}', space=sflag, size = 0x8, scoped, tag = 'scoped memory for tpu_custom_call.1']
    #allocation5 [shape = 'u8[8192]{0}', space=vmem, size = 0x2000, scoped, tag = 'input window, operand 1, single buffered']
    #allocation6 [shape = 's32[1]{0}', space=sflag, size = 0x4, scoped, tag = 'scoped memory for tpu_custom_call.1']
    #allocation7 [shape = 'u8[32768]{0}', space=vmem, size = 0x8000, scoped, tag = 'input window, operand 3, single buffered']
    #allocation8 [shape = 'u8[32768]{0}', space=vmem, size = 0x8000, scoped, tag = 'input window, operand 5, single buffered']
    #allocation9 [shape = 's32[1]{0}', space=sflag, size = 0x4, scoped, tag = 'scoped memory for tpu_custom_call.1']
    #allocation10 [shape = 'u8[8192]{0}', space=vmem, size = 0x2000, scoped, tag = 'output window, operand 0']
    %12 = vsyncpa [#allocation3], 0
    %s13 = scalar_lea.sflag [#allocation3], 1
    %14 = vsyncpa %s13, 0
    %15 = vsyncpa [#allocation6], 0
    %16 = vsyncpa [#allocation9], 0
    %17 = vsyncpa [#allocation4], 0
    %s18 = scalar_lea.sflag [#allocation4], 1
    %19 = vsyncpa %s18, 0
    loop: start=0, step=1, limit=4
    $region2: #{tpu_custom_call.1} parent=1 // loop_pre_header
      _
    $region3: #{tpu_custom_call.1} parent=1 // loop_header
      %s21 = sphi 0, %s25
      %p22 = scmp.ge.s32.totalorder %s21, 4
      %s31 = sphi 0, %s33
      %s34 = sphi 0, %s31
      %s35 = sphi 0, %s34
      %s51 = sphi 0, %s35
      %s55 = sphi 0, %s55
      %s57 = sphi 0, %s55
      %s58 = sphi 0, %s57
      %s72 = sphi 0, %s58
      %s76 = sphi 0, %s76
      %s78 = sphi 0, %s76
      %s79 = sphi 0, %s78
      %s93 = sphi 0, %s79
      %s97 = sphi 0, %s97
      %s99 = sphi 0, %s97
      %s100 = sphi 0, %s99
      %s114 = sphi 0, %s100
      %s118 = sphi 0, %s118
      %s120 = sphi 0, %s118
      %s121 = sphi 0, %s120
      %s135 = sphi 0, %s121
      %s139 = sphi 0, %s139
      %s141 = sphi 0, %s139
      %s142 = sphi 0, %s141
      %s156 = sphi 0, %s142
      %s160 = sphi 0, %s160
      %s162 = sphi 0, %s160
      %s163 = sphi 0, %s162
      %s177 = sphi 0, %s163
      %s183 = sphi 0, %s185
      %s186 = sphi 0, %s183
      %s187 = sphi 0, %s186
      %s203 = sphi 0, %s187
    $region4: #{tpu_custom_call.1} parent=1 // loop_header_branch
      %24 = sbr.rel (%p22) target = $region8
    $region5: #{tpu_custom_call.1} parent=1 // loop_body
      %s26 = ssub.s32 %s21, 1
      %s27 = ssub.s32 %s21, 2
      %s28 = sadd.s32 %s21, 1
      %s29 = ssub.s32 %s21, %s28
      %p30 = scmp.eq.s32.totalorder %s29, 0
      %s32 = sadd.s32 %s31, 1
      %s33 = scalar_select %p30, %s31, %s32
      %p36 = pneg %p30
      %p37 = scmp.eq.s32.totalorder %s21, 1
      %p38 = por %p36, %p37
      %p39 = scmp.ne.s32.totalorder %s31, %s34
      %p40 = scmp.eq.s32.totalorder %s21, 0
      %p41 = por %p39, %p40
      %p42 = scmp.ne.s32.totalorder %s31, %s34
      %p43 = scmp.eq.s32.totalorder %s26, 1
      %p44 = por %p42, %p43
      %p45 = scmp.ne.s32.totalorder %s34, %s35
      %p46 = scmp.eq.s32.totalorder %s26, 0
      %p47 = por %p45, %p46
      %p48 = scmp.ne.s32.totalorder %s34, %s35
      %p49 = scmp.eq.s32.totalorder %s27, 1
      %p50 = por %p48, %p49
      %p52 = scmp.ne.s32.totalorder %s35, %s51
      %p53 = scmp.eq.s32.totalorder %s27, 0
      %p54 = por %p52, %p53
      %s56 = sadd.s32 %s55, 1
      %p59 = scmp.eq.s32.totalorder %s21, 1
      %p60 = scmp.ne.s32.totalorder %s55, %s57
      %p61 = scmp.eq.s32.totalorder %s21, 0
      %p62 = por %p60, %p61
      %p63 = scmp.ne.s32.totalorder %s55, %s57
      %p64 = scmp.eq.s32.totalorder %s26, 1
      %p65 = por %p63, %p64
      %p66 = scmp.ne.s32.totalorder %s57, %s58
      %p67 = scmp.eq.s32.totalorder %s26, 0
      %p68 = por %p66, %p67
      %p69 = scmp.ne.s32.totalorder %s57, %s58
      %p70 = scmp.eq.s32.totalorder %s27, 1
      %p71 = por %p69, %p70
      %p73 = scmp.ne.s32.totalorder %s58, %s72
      %p74 = scmp.eq.s32.totalorder %s27, 0
      %p75 = por %p73, %p74
      %s77 = sadd.s32 %s76, 1
      %p80 = scmp.eq.s32.totalorder %s21, 1
      %p81 = scmp.ne.s32.totalorder %s76, %s78
      %p82 = scmp.eq.s32.totalorder %s21, 0
      %p83 = por %p81, %p82
      %p84 = scmp.ne.s32.totalorder %s76, %s78
      %p85 = scmp.eq.s32.totalorder %s26, 1
      %p86 = por %p84, %p85
      %p87 = scmp.ne.s32.totalorder %s78, %s79
      %p88 = scmp.eq.s32.totalorder %s26, 0
      %p89 = por %p87, %p88
      %p90 = scmp.ne.s32.totalorder %s78, %s79
      %p91 = scmp.eq.s32.totalorder %s27, 1
      %p92 = por %p90, %p91
      %p94 = scmp.ne.s32.totalorder %s79, %s93
      %p95 = scmp.eq.s32.totalorder %s27, 0
      %p96 = por %p94, %p95
      %s98 = sadd.s32 %s97, 1
      %p101 = scmp.eq.s32.totalorder %s21, 1
      %p102 = scmp.ne.s32.totalorder %s97, %s99
      %p103 = scmp.eq.s32.totalorder %s21, 0
      %p104 = por %p102, %p103
      %p105 = scmp.ne.s32.totalorder %s97, %s99
      %p106 = scmp.eq.s32.totalorder %s26, 1
      %p107 = por %p105, %p106
      %p108 = scmp.ne.s32.totalorder %s99, %s100
      %p109 = scmp.eq.s32.totalorder %s26, 0
      %p110 = por %p108, %p109
      %p111 = scmp.ne.s32.totalorder %s99, %s100
      %p112 = scmp.eq.s32.totalorder %s27, 1
      %p113 = por %p111, %p112
      %p115 = scmp.ne.s32.totalorder %s100, %s114
      %p116 = scmp.eq.s32.totalorder %s27, 0
      %p117 = por %p115, %p116
      %s119 = sadd.s32 %s118, 1
      %p122 = scmp.eq.s32.totalorder %s21, 1
      %p123 = scmp.ne.s32.totalorder %s118, %s120
      %p124 = scmp.eq.s32.totalorder %s21, 0
      %p125 = por %p123, %p124
      %p126 = scmp.ne.s32.totalorder %s118, %s120
      %p127 = scmp.eq.s32.totalorder %s26, 1
      %p128 = por %p126, %p127
      %p129 = scmp.ne.s32.totalorder %s120, %s121
      %p130 = scmp.eq.s32.totalorder %s26, 0
      %p131 = por %p129, %p130
      %p132 = scmp.ne.s32.totalorder %s120, %s121
      %p133 = scmp.eq.s32.totalorder %s27, 1
      %p134 = por %p132, %p133
      %p136 = scmp.ne.s32.totalorder %s121, %s135
      %p137 = scmp.eq.s32.totalorder %s27, 0
      %p138 = por %p136, %p137
      %s140 = sadd.s32 %s139, 1
      %p143 = scmp.eq.s32.totalorder %s21, 1
      %p144 = scmp.ne.s32.totalorder %s139, %s141
      %p145 = scmp.eq.s32.totalorder %s21, 0
      %p146 = por %p144, %p145
      %p147 = scmp.ne.s32.totalorder %s139, %s141
      %p148 = scmp.eq.s32.totalorder %s26, 1
      %p149 = por %p147, %p148
      %p150 = scmp.ne.s32.totalorder %s141, %s142
      %p151 = scmp.eq.s32.totalorder %s26, 0
      %p152 = por %p150, %p151
      %p153 = scmp.ne.s32.totalorder %s141, %s142
      %p154 = scmp.eq.s32.totalorder %s27, 1
      %p155 = por %p153, %p154
      %p157 = scmp.ne.s32.totalorder %s142, %s156
      %p158 = scmp.eq.s32.totalorder %s27, 0
      %p159 = por %p157, %p158
      %s161 = sadd.s32 %s160, 1
      %p164 = scmp.eq.s32.totalorder %s21, 1
      %p165 = scmp.ne.s32.totalorder %s160, %s162
      %p166 = scmp.eq.s32.totalorder %s21, 0
      %p167 = por %p165, %p166
      %p168 = scmp.ne.s32.totalorder %s160, %s162
      %p169 = scmp.eq.s32.totalorder %s26, 1
      %p170 = por %p168, %p169
      %p171 = scmp.ne.s32.totalorder %s162, %s163
      %p172 = scmp.eq.s32.totalorder %s26, 0
      %p173 = por %p171, %p172
      %p174 = scmp.ne.s32.totalorder %s162, %s163
      %p175 = scmp.eq.s32.totalorder %s27, 1
      %p176 = por %p174, %p175
      %p178 = scmp.ne.s32.totalorder %s163, %s177
      %p179 = scmp.eq.s32.totalorder %s27, 0
      %p180 = por %p178, %p179
      %s181 = ssub.s32 %s21, %s28
      %p182 = scmp.eq.s32.totalorder %s181, 0
      %s184 = sadd.s32 %s183, 1
      %s185 = scalar_select %p182, %s183, %s184
      %p188 = pneg %p182
      %p189 = scmp.eq.s32.totalorder %s21, 1
      %p190 = por %p188, %p189
      %p191 = scmp.ne.s32.totalorder %s183, %s186
      %p192 = scmp.eq.s32.totalorder %s21, 0
      %p193 = por %p191, %p192
      %p194 = scmp.ne.s32.totalorder %s183, %s186
      %p195 = scmp.eq.s32.totalorder %s26, 1
      %p196 = por %p194, %p195
      %p197 = scmp.ne.s32.totalorder %s186, %s187
      %p198 = scmp.eq.s32.totalorder %s26, 0
      %p199 = por %p197, %p198
      %p200 = scmp.ne.s32.totalorder %s186, %s187
      %p201 = scmp.eq.s32.totalorder %s27, 1
      %p202 = por %p200, %p201
      %p204 = scmp.ne.s32.totalorder %s187, %s203
      %p205 = scmp.eq.s32.totalorder %s27, 0
      %p206 = por %p204, %p205
      %p207 = scmp.le.s32.totalorder 1, %s21
      %p208 = scmp.lt.s32.totalorder %s21, 3
      %p209 = pnand %p207, %p208
      %p210 = pneg %p209
      // Predicated region
      $region9: #{tpu_custom_call.1} parent=5 // pred_check
        _
      $region10: #{tpu_custom_call.1} parent=5 // pred_check_branch
        %212 = sbr.rel (%p209) target = $region12
      $region11: #{tpu_custom_call.1} parent=5 // pred_region
        %s213 = ssub.s32 %s21, 1
        // Predicated region
        $region13: #{tpu_custom_call.1} parent=11 // pred_check
          %p214 = pneg %p68
        $region14: #{tpu_custom_call.1} parent=11 // pred_check_branch
          %216 = sbr.rel (%p214) target = $region16
        $region15: #{tpu_custom_call.1} parent=11 // pred_region
          %218 = vsyncadd [#allocation6], 0
          %s219 = sshll.u32 %s1, 4
          %s220 = int_to_ptr.hbm [resolvable:$true] %s219
          %s221 = sshll.u32 [#allocation5], 4
          %s222 = int_to_ptr.vmem [resolvable:$true] %s221
          %227 = dma.hbm_to_vmem [thread:$0]  %s220, 256, %s222, [#allocation6], 64, 64, 4
        $region16: #{tpu_custom_call.1} parent=11 // pred_fallthru
          _
        // Predicated region
        $region17: #{tpu_custom_call.1} parent=11 // pred_check
          %p228 = pneg %p89
        $region18: #{tpu_custom_call.1} parent=11 // pred_check_branch
          %230 = sbr.rel (%p228) target = $region20
        $region19: #{tpu_custom_call.1} parent=11 // pred_region
          _
        $region20: #{tpu_custom_call.1} parent=11 // pred_fallthru
          _
        // Predicated region
        $region21: #{tpu_custom_call.1} parent=11 // pred_check
          %p231 = pneg %p110
        $region22: #{tpu_custom_call.1} parent=11 // pred_check_branch
          %233 = sbr.rel (%p231) target = $region24
        $region23: #{tpu_custom_call.1} parent=11 // pred_region
          %235 = vsyncadd [#allocation6], 0
          %s236 = sshll.u32 %s3, 4
          %s237 = int_to_ptr.hbm [resolvable:$true] %s236
          %s238 = sshll.u32 [#allocation7], 4
          %s239 = int_to_ptr.vmem [resolvable:$true] %s238
          %244 = dma.hbm_to_vmem [thread:$0]  %s237, 1024, %s239, [#allocation6], 64, 64, 4
        $region24: #{tpu_custom_call.1} parent=11 // pred_fallthru
          _
        // Predicated region
        $region25: #{tpu_custom_call.1} parent=11 // pred_check
          %p245 = pneg %p131
        $region26: #{tpu_custom_call.1} parent=11 // pred_check_branch
          %247 = sbr.rel (%p245) target = $region28
        $region27: #{tpu_custom_call.1} parent=11 // pred_region
          _
        $region28: #{tpu_custom_call.1} parent=11 // pred_fallthru
          _
        // Predicated region
        $region29: #{tpu_custom_call.1} parent=11 // pred_check
          %p248 = pneg %p152
        $region30: #{tpu_custom_call.1} parent=11 // pred_check_branch
          %250 = sbr.rel (%p248) target = $region32
        $region31: #{tpu_custom_call.1} parent=11 // pred_region
          %252 = vsyncadd [#allocation9], 0
          %s253 = sshll.u32 %s5, 4
          %s254 = int_to_ptr.hbm [resolvable:$true] %s253
          %s255 = sshll.u32 [#allocation8], 4
          %s256 = int_to_ptr.vmem [resolvable:$true] %s255
          %261 = dma.hbm_to_vmem [thread:$0]  %s254, 1024, %s256, [#allocation9], 64, 64, 4
        $region32: #{tpu_custom_call.1} parent=11 // pred_fallthru
          _
        // Predicated region
        $region33: #{tpu_custom_call.1} parent=11 // pred_check
          %p262 = pneg %p173
        $region34: #{tpu_custom_call.1} parent=11 // pred_check_branch
          %264 = sbr.rel (%p262) target = $region36
        $region35: #{tpu_custom_call.1} parent=11 // pred_region
          _
        $region36: #{tpu_custom_call.1} parent=11 // pred_fallthru
          _
      $region12: #{tpu_custom_call.1} parent=5 // pred_fallthru
        _
      %p265 = scmp.lt.s32.totalorder %s21, 2
      // Predicated region
      $region37: #{tpu_custom_call.1} parent=5 // pred_check
        %p266 = pneg %p265
      $region38: #{tpu_custom_call.1} parent=5 // pred_check_branch
        %268 = sbr.rel (%p266) target = $region40
      $region39: #{tpu_custom_call.1} parent=5 // pred_region
        // Predicated region
        $region41: #{tpu_custom_call.1} parent=39 // pred_check
          %p269 = pneg %p41
        $region42: #{tpu_custom_call.1} parent=39 // pred_check_branch
          %271 = sbr.rel (%p269) target = $region44
        $region43: #{tpu_custom_call.1} parent=39 // pred_region
          %s272 = sand.u32 %s31, 1
          %s273 = scalar_lea.sflag [#allocation3], %s272
          %s274 = sand.u32 %s31, 1
          %s275 = smul.addr %s274, 16
          %s276 = scalar_lea.vmem [#allocation2], %s275
          %s277 = smul.u32 2, %s21
          %279 = vsyncadd %s273, 0
          %s280 = smul.addr %s277, 8
          %s281 = scalar_lea.hbm %s0, %s280
          %s282 = sshll.u32 %s281, 4
          %s283 = int_to_ptr.hbm [resolvable:$true] %s282
          %s284 = sshll.u32 %s276, 4
          %s285 = int_to_ptr.vmem [resolvable:$true] %s284
          %290 = dma.hbm_to_vmem [thread:$0]  %s283, 256, %s285, %s273, 128, 128, 8
        $region44: #{tpu_custom_call.1} parent=39 // pred_fallthru
          _
      $region40: #{tpu_custom_call.1} parent=5 // pred_fallthru
        _
      %p291 = scmp.le.s32.totalorder 1, %s21
      %p292 = scmp.lt.s32.totalorder %s21, 3
      %p293 = pnand %p291, %p292
      %p294 = pneg %p293
      // Predicated region
      $region45: #{tpu_custom_call.1} parent=5 // pred_check
        _
      $region46: #{tpu_custom_call.1} parent=5 // pred_check_branch
        %296 = sbr.rel (%p293) target = $region48
      $region47: #{tpu_custom_call.1} parent=5 // pred_region
        %s297 = ssub.s32 %s21, 1
        %s298 = sand.u32 %s34, 1
        %s299 = scalar_lea.sflag [#allocation3], %s298
        %s300 = sand.u32 %s34, 1
        %s301 = smul.addr %s300, 16
        %s302 = scalar_lea.vmem [#allocation2], %s301
        // Predicated region
        $region49: #{tpu_custom_call.1} parent=47 // pred_check
          %p303 = pneg %p47
        $region50: #{tpu_custom_call.1} parent=47 // pred_check_branch
          %305 = sbr.rel (%p303) target = $region52
        $region51: #{tpu_custom_call.1} parent=47 // pred_region
          %307 = dma.done %s299, 256
        $region52: #{tpu_custom_call.1} parent=47 // pred_fallthru
          _
        // Predicated region
        $region53: #{tpu_custom_call.1} parent=47 // pred_check
          %p308 = pneg %p68
        $region54: #{tpu_custom_call.1} parent=47 // pred_check_branch
          %310 = sbr.rel (%p308) target = $region56
        $region55: #{tpu_custom_call.1} parent=47 // pred_region
          %312 = dma.done [#allocation6], 256
        $region56: #{tpu_custom_call.1} parent=47 // pred_fallthru
          _
        // Predicated region
        $region57: #{tpu_custom_call.1} parent=47 // pred_check
          %p313 = pneg %p110
        $region58: #{tpu_custom_call.1} parent=47 // pred_check_branch
          %315 = sbr.rel (%p313) target = $region60
        $region59: #{tpu_custom_call.1} parent=47 // pred_region
          %317 = dma.done [#allocation6], 1024
        $region60: #{tpu_custom_call.1} parent=47 // pred_fallthru
          _
        // Predicated region
        $region61: #{tpu_custom_call.1} parent=47 // pred_check
          %p318 = pneg %p152
        $region62: #{tpu_custom_call.1} parent=47 // pred_check_branch
          %320 = sbr.rel (%p318) target = $region64
        $region63: #{tpu_custom_call.1} parent=47 // pred_region
          %322 = dma.done [#allocation9], 1024
        $region64: #{tpu_custom_call.1} parent=47 // pred_fallthru
          _
        %s323 = sand.u32 %s34, 1
        %s324 = scalar_lea.sflag [#allocation3], %s323
        %s325 = sand.u32 %s34, 1
        %s326 = smul.addr %s325, 16
        %s327 = scalar_lea.vmem [#allocation2], %s326
        %p328 = pneg %p47
        %p329 = pneg %p44
        %p330 = pneg %p68
        %p331 = pneg %p65
        %p332 = pneg %p89
        %p333 = pneg %p86
        %p334 = pneg %p110
        %p335 = pneg %p107
        %p336 = pneg %p131
        %p337 = pneg %p128
        %p338 = pneg %p152
        %p339 = pneg %p149
        %p340 = pneg %p173
        %p341 = pneg %p170
        %p342 = pneg %p199
        %p343 = pneg %p196
        %s344 = sand.u32 %s186, 1
        %s345 = scalar_lea.sflag [#allocation4], %s344
        %s346 = sand.u32 %s186, 1
        %s347 = smul.addr %s346, 8
        %s348 = scalar_lea.vmem [#allocation10], %s347
        %s349 = smul.u32 2, %s26
        %s350 = smul.u32 2, %s26
        %v352 = vld [vmem:[%s302] sm:$0xff]
        %v353 = vld [vmem:[%s302 + $0x8] sm:$0xff]
        %v354 = vpack.c.bf16 %v353, %v352
        %v355 = vld [vmem:[#allocation5] sm:$0xf]
        %v356 = vld [vmem:[#allocation5 + $0x4] sm:$0xf]
        %v357 = vld [vmem:[#allocation5 + $0x8] sm:$0xf]
        %v358 = vld [vmem:[#allocation5 + $0xc] sm:$0xf]
        %v359 = vld [vmem:[%s2] sm:$0x1]
        %v361 = vperm.slane %v359, 0
        %v367 = vunpack.c.l.b16 %v355
        %v368 = vunpack.c.l.b16 %v356
        %v369 = vunpack.c.l.b16 %v357
        %v370 = vunpack.c.l.b16 %v358
        %v371 = vpack.c.b16 %v368, %v367
        %v372 = vpack.c.b16 %v370, %v369
        %vm375 = vcmask 261120
        %v377 = vsel %vm375, %v354, 0
        %379 = vmatpush.bf16.msra.mxu0 0
        %380 = vmatpush.bf16.msra.mxu0 0
        %381 = vmatpush.bf16.msra.mxu0 0
        %382 = vmatpush.bf16.msra.mxu0 0
        %383 = vmatpush.bf16.msra.mxu0 0
        %384 = vmatpush.bf16.msra.mxu0 0
        %385 = vmatpush.bf16.msra.mxu0 %v372
        %386 = vmatpush.bf16.msra.mxu0 %v371
        %387 = vmatmul.bf16.gmra.mxu0 %v377
        %v388 = vpop.f32.mrf.mxu0
        %v389 = vadd.f32 %v361, %v388
        %v390 = vpop.f32.mrf.mxu0
        %v391 = vadd.f32 %v361, %v390
        %392 = vdwg.mxu0
        %v393 = vmax.f32 %v389, 0.0
        %v394 = vmax.f32 %v391, 0.0
        %v395 = vpack.c.bf16 %v394, %v393
        %v396 = vld [vmem:[#allocation7] sm:$0xf]
        %v397 = vld [vmem:[#allocation7 + $0x4] sm:$0xf]
        %v398 = vld [vmem:[#allocation7 + $0x8] sm:$0xf]
        %v399 = vld [vmem:[#allocation7 + $0xc] sm:$0xf]
        %v400 = vld [vmem:[#allocation7 + $0x10] sm:$0xf]
        %v401 = vld [vmem:[#allocation7 + $0x14] sm:$0xf]
        %v402 = vld [vmem:[#allocation7 + $0x18] sm:$0xf]
        %v403 = vld [vmem:[#allocation7 + $0x1c] sm:$0xf]
        %v404 = vld [vmem:[#allocation7 + $0x20] sm:$0xf]
        %v405 = vld [vmem:[#allocation7 + $0x24] sm:$0xf]
        %v406 = vld [vmem:[#allocation7 + $0x28] sm:$0xf]
        %v407 = vld [vmem:[#allocation7 + $0x2c] sm:$0xf]
        %v408 = vld [vmem:[#allocation7 + $0x30] sm:$0xf]
        %v409 = vld [vmem:[#allocation7 + $0x34] sm:$0xf]
        %v410 = vld [vmem:[#allocation7 + $0x38] sm:$0xf]
        %v411 = vld [vmem:[#allocation7 + $0x3c] sm:$0xf]
        %v412 = vld [vmem:[%s4] sm:$0x1]
        %v414 = vperm.slane %v412, 0
        %v432 = vunpack.c.l.b16 %v396
        %v433 = vunpack.c.l.b16 %v397
        %v434 = vunpack.c.l.b16 %v398
        %v435 = vunpack.c.l.b16 %v399
        %v436 = vunpack.c.l.b16 %v400
        %v437 = vunpack.c.l.b16 %v401
        %v438 = vunpack.c.l.b16 %v402
        %v439 = vunpack.c.l.b16 %v403
        %v440 = vunpack.c.l.b16 %v404
        %v441 = vunpack.c.l.b16 %v405
        %v442 = vunpack.c.l.b16 %v406
        %v443 = vunpack.c.l.b16 %v407
        %v444 = vunpack.c.l.b16 %v408
        %v445 = vunpack.c.l.b16 %v409
        %v446 = vunpack.c.l.b16 %v410
        %v447 = vunpack.c.l.b16 %v411
        %v448 = vpack.c.b16 %v433, %v432
        %v449 = vpack.c.b16 %v435, %v434
        %v450 = vpack.c.b16 %v437, %v436
        %v451 = vpack.c.b16 %v439, %v438
        %v452 = vpack.c.b16 %v441, %v440
        %v453 = vpack.c.b16 %v443, %v442
        %v454 = vpack.c.b16 %v445, %v444
        %v455 = vpack.c.b16 %v447, %v446
        %464 = vmatpush.bf16.msra.mxu0 %v455
        %465 = vmatpush.bf16.msra.mxu0 %v454
        %466 = vmatpush.bf16.msra.mxu0 %v453
        %467 = vmatpush.bf16.msra.mxu0 %v452
        %468 = vmatpush.bf16.msra.mxu0 %v451
        %469 = vmatpush.bf16.msra.mxu0 %v450
        %470 = vmatpush.bf16.msra.mxu0 %v449
        %471 = vmatpush.bf16.msra.mxu0 %v448
        %472 = vmatmul.bf16.gmra.mxu0 %v395
        %v473 = vpop.f32.mrf.mxu0
        %v474 = vadd.f32 %v414, %v473
        %v475 = vpop.f32.mrf.mxu0
        %v476 = vadd.f32 %v414, %v475
        %477 = vdwg.mxu0
        %v478 = vpack.c.bf16 %v476, %v474
        %v479 = vld [vmem:[#allocation8] sm:$0xf]
        %v480 = vld [vmem:[#allocation8 + $0x4] sm:$0xf]
        %v481 = vld [vmem:[#allocation8 + $0x8] sm:$0xf]
        %v482 = vld [vmem:[#allocation8 + $0xc] sm:$0xf]
        %v483 = vld [vmem:[#allocation8 + $0x10] sm:$0xf]
        %v484 = vld [vmem:[#allocation8 + $0x14] sm:$0xf]
        %v485 = vld [vmem:[#allocation8 + $0x18] sm:$0xf]
        %v486 = vld [vmem:[#allocation8 + $0x1c] sm:$0xf]
        %v487 = vld [vmem:[#allocation8 + $0x20] sm:$0xf]
        %v488 = vld [vmem:[#allocation8 + $0x24] sm:$0xf]
        %v489 = vld [vmem:[#allocation8 + $0x28] sm:$0xf]
        %v490 = vld [vmem:[#allocation8 + $0x2c] sm:$0xf]
        %v491 = vld [vmem:[#allocation8 + $0x30] sm:$0xf]
        %v492 = vld [vmem:[#allocation8 + $0x34] sm:$0xf]
        %v493 = vld [vmem:[#allocation8 + $0x38] sm:$0xf]
        %v494 = vld [vmem:[#allocation8 + $0x3c] sm:$0xf]
        %v495 = vld [vmem:[%s6] sm:$0x1]
        %v497 = vperm.slane %v495, 0
        %v515 = vunpack.c.l.b16 %v479
        %v516 = vunpack.c.l.b16 %v480
        %v517 = vunpack.c.l.b16 %v481
        %v518 = vunpack.c.l.b16 %v482
        %v519 = vunpack.c.l.b16 %v483
        %v520 = vunpack.c.l.b16 %v484
        %v521 = vunpack.c.l.b16 %v485
        %v522 = vunpack.c.l.b16 %v486
        %v523 = vunpack.c.l.b16 %v487
        %v524 = vunpack.c.l.b16 %v488
        %v525 = vunpack.c.l.b16 %v489
        %v526 = vunpack.c.l.b16 %v490
        %v527 = vunpack.c.l.b16 %v491
        %v528 = vunpack.c.l.b16 %v492
        %v529 = vunpack.c.l.b16 %v493
        %v530 = vunpack.c.l.b16 %v494
        %v531 = vpack.c.b16 %v516, %v515
        %v532 = vpack.c.b16 %v518, %v517
        %v533 = vpack.c.b16 %v520, %v519
        %v534 = vpack.c.b16 %v522, %v521
        %v535 = vpack.c.b16 %v524, %v523
        %v536 = vpack.c.b16 %v526, %v525
        %v537 = vpack.c.b16 %v528, %v527
        %v538 = vpack.c.b16 %v530, %v529
        %547 = vmatpush.bf16.msra.mxu0 %v538
        %548 = vmatpush.bf16.msra.mxu0 %v537
        %549 = vmatpush.bf16.msra.mxu0 %v536
        %550 = vmatpush.bf16.msra.mxu0 %v535
        %551 = vmatpush.bf16.msra.mxu0 %v534
        %552 = vmatpush.bf16.msra.mxu0 %v533
        %553 = vmatpush.bf16.msra.mxu0 %v532
        %554 = vmatpush.bf16.msra.mxu0 %v531
        %555 = vmatmul.bf16.gmra.mxu0 %v478
        %v556 = vpop.f32.mrf.mxu0
        %v557 = vadd.f32 %v497, %v556
        %v558 = vpop.f32.mrf.mxu0
        %v559 = vadd.f32 %v497, %v558
        %560 = vdwg.mxu0
        %v561 = vlaneseq
        %v562 = vand.u32 %v561, 127
        %vm563 = vcmp.lt.s32.totalorder %v562, 8
        %v564 = vsel %vm563, %v557, -1e+30
        %v565 = vsel %vm563, %v559, -1e+30
        %566 = vmax.xlane.f32.xlu0 %v564
        %v567 = vpop.xlane.xlu0 %566
        %568 = vmax.xlane.f32.xlu0 %v565
        %v569 = vpop.xlane.xlu0 %568
        %v570 = vsub.f32 %v564, %v567
        %v571 = vsub.f32 %v565, %v569
        %v572 = vmul.f32 %v570, 1.442695
        %v573 = vpow.pop %v572
        %v574 = vmul.f32 %v571, 1.442695
        %v575 = vpow.pop %v574
        %576 = vadd.xlane.f32.xlu0 %v573
        %v577 = vpop.xlane.xlu0 %576
        %578 = vadd.xlane.f32.xlu0 %v575
        %v579 = vpop.xlane.xlu0 %578
        %v580 = vrcp.pop %v577
        %v581 = vrcp.pop %v579
        %v582 = vmul.f32 %v577, %v580
        %v583 = vmul.f32 %v579, %v581
        %v584 = vsub.f32 2.0, %v582
        %v585 = vsub.f32 2.0, %v583
        %v586 = vmul.f32 %v580, %v584
        %v587 = vmul.f32 %v581, %v585
        %v588 = vmul.f32 %v573, %v586
        %v589 = vmul.f32 %v575, %v587
        %vm590 = vcmp.eq.s32.totalorder %v562, 8
        %v591 = vsel %vm590, %v557, %v588
        %v592 = vsel %vm590, %v559, %v589
        %v593 = vpack.c.bf16 %v591, %v591
        %v594 = vpack.c.bf16 %v592, %v592
        %595 = vst [vmem:[%s348] sm:$0xf] %v593
        %596 = vst [vmem:[%s348 + $0x4] sm:$0xf] %v594
        %s597 = sand.u32 %s186, 1
        %s598 = scalar_lea.sflag [#allocation4], %s597
        %s599 = sand.u32 %s186, 1
        %s600 = smul.addr %s599, 8
        %s601 = scalar_lea.vmem [#allocation10], %s600
        // Predicated region
        $region65: #{tpu_custom_call.1} parent=47 // pred_check
          %p602 = pneg %p196
        $region66: #{tpu_custom_call.1} parent=47 // pred_check_branch
          %604 = sbr.rel (%p602) target = $region68
        $region67: #{tpu_custom_call.1} parent=47 // pred_region
          %s605 = smul.u32 2, %s26
          %607 = vsyncadd %s598, 0
          %s608 = smul.addr %s605, 4
          %s609 = scalar_lea.hbm %s7, %s608
          %s610 = sshll.u32 %s601, 4
          %s611 = int_to_ptr.vmem [resolvable:$true] %s610
          %s612 = sshll.u32 %s609, 4
          %s613 = int_to_ptr.hbm [resolvable:$true] %s612
          %618 = dma.vmem_to_hbm [thread:$0]  %s611, 128, %s613, %s598, 64, 64, 4
        $region68: #{tpu_custom_call.1} parent=47 // pred_fallthru
          _
      $region48: #{tpu_custom_call.1} parent=5 // pred_fallthru
        _
      %p619 = scmp.le.s32.totalorder 2, %s21
      // Predicated region
      $region69: #{tpu_custom_call.1} parent=5 // pred_check
        %p620 = pneg %p619
      $region70: #{tpu_custom_call.1} parent=5 // pred_check_branch
        %622 = sbr.rel (%p620) target = $region72
      $region71: #{tpu_custom_call.1} parent=5 // pred_region
        %s623 = ssub.s32 %s21, 2
        // Predicated region
        $region73: #{tpu_custom_call.1} parent=71 // pred_check
          %p624 = pneg %p202
        $region74: #{tpu_custom_call.1} parent=71 // pred_check_branch
          %626 = sbr.rel (%p624) target = $region76
        $region75: #{tpu_custom_call.1} parent=71 // pred_region
          %s627 = sand.u32 %s187, 1
          %s628 = scalar_lea.sflag [#allocation4], %s627
          %s629 = sand.u32 %s187, 1
          %s630 = smul.addr %s629, 8
          %s631 = scalar_lea.vmem [#allocation10], %s630
          %633 = dma.done %s628, 128
        $region76: #{tpu_custom_call.1} parent=71 // pred_fallthru
          _
      $region72: #{tpu_custom_call.1} parent=5 // pred_fallthru
        _
    $region6: #{tpu_custom_call.1} parent=1 // loop_footer
      %s25 = sadd.s32 1, %s21
    $region7: #{tpu_custom_call.1} parent=1 // loop_footer_branch
      %20 = sbr.rel target = $region3
    $region8: #{tpu_custom_call.1} parent=1 // loop_exit
      _
    %634 = vsyncpa [#allocation3], 1
    %s635 = scalar_lea.sflag [#allocation3], 1
    %636 = vsyncpa %s635, 1
    %637 = vsyncpa [#allocation6], 1
    %638 = vsyncpa [#allocation9], 1
    %639 = vsyncpa [#allocation4], 1
    %s640 = scalar_lea.sflag [#allocation4], 1
    %641 = vsyncpa %s640, 1

</llo_original>
